<compile_context>
chip_gen: v7x
topology: tpu7x:2x2x1
jax: 0.10.0
libtpu: 0.0.40
codegen_flags: <defaults>
</compile_context>

<pallas_src>
import jax
import jax.numpy as jnp
from jax import lax
from jax.experimental import pallas as pl
from jax.experimental.pallas import tpu as pltpu

EPS = 1e-6


def _layernorm_kernel(x_ref, w_ref, b_ref, o_ref):
    # x_ref block: (1, C, T) -- one batch element, all channels, T spatial pts.
    x = x_ref[...].astype(jnp.float32)
    u = jnp.mean(x, axis=1, keepdims=True)            # (1, 1, T) mean over C
    xc = x - u
    s = jnp.mean(xc * xc, axis=1, keepdims=True)      # (1, 1, T) biased var
    inv = lax.rsqrt(s + EPS)                          # rsqrt on reduced tensor
    w = w_ref[...].reshape(1, 1, -1).astype(jnp.float32)   # (1, 1, T)
    b = b_ref[...].reshape(1, 1, -1).astype(jnp.float32)   # (1, 1, T)
    scale = w * inv                                   # fold weight into inv
    o_ref[...] = (scale * xc + b).astype(o_ref.dtype)


def _pick_spatial_tile(hw, c, itemsize, target_bytes=2 << 20):
    """Largest multiple of 128 dividing hw whose (C, T) block stays moderate."""
    if hw % 128 != 0:
        return hw  # full-extent block satisfies the (8,128) rule
    max_elems = max(128, target_bytes // max(1, c * itemsize))
    best = 128
    t = 128
    while t <= hw:
        if hw % t == 0 and t <= max_elems:
            best = t
        t += 128
    return best


def layernorm_convnextv2(x, weight, bias):
    """x: (B, C, H, W); weight/bias: (W,) i.e. normalized_shape == W."""
    B, C, H, W = x.shape
    HW = H * W

    # Lane-dense layout: flatten spatial dims into the last axis.
    x_flat = x.reshape(B, C, HW)
    # weight[None,None,None,:] broadcasts over (H, W); after flattening the
    # per-element factor at position h*W + w is weight[w] -> tile H times.
    w_flat = jnp.tile(weight, H).reshape(1, HW)
    b_flat = jnp.tile(bias, H).reshape(1, HW)

    T = _pick_spatial_tile(HW, C, x.dtype.itemsize)
    n_sp = HW // T

    out_flat = pl.pallas_call(
        _layernorm_kernel,
        out_shape=jax.ShapeDtypeStruct((B, C, HW), x.dtype),
        grid_spec=pltpu.PrefetchScalarGridSpec(
            num_scalar_prefetch=0,
            grid=(B, n_sp),
            in_specs=[
                pl.BlockSpec((1, C, T), lambda b, s: (b, 0, s)),
                pl.BlockSpec((1, T), lambda b, s: (0, s)),
                pl.BlockSpec((1, T), lambda b, s: (0, s)),
            ],
            out_specs=pl.BlockSpec((1, C, T), lambda b, s: (b, 0, s)),
        ),
        compiler_params=pltpu.CompilerParams(
            dimension_semantics=("parallel", "parallel"),
            vmem_limit_bytes=48 * 1024 * 1024,
        ),
    )(x_flat, w_flat, b_flat)

    return out_flat.reshape(B, C, H, W)


def _reference(x, weight, bias):
    u = jnp.mean(x, axis=1, keepdims=True)
    s = jnp.mean((x - u) ** 2, axis=1, keepdims=True)
    xn = (x - u) / jnp.sqrt(s + EPS)
    return weight[None, None, None, :] * xn + bias[None, None, None, :]


if __name__ == "__main__":
    B, C, H, W = 2, 4, 16, 16
    key = jax.random.PRNGKey(0)
    x = jax.random.normal(key, (B, C, H, W), dtype=jnp.float32)

    # Deterministic parameter init matching the module's __init__:
    # weight = ones(normalized_shape), bias = zeros(normalized_shape),
    # with normalized_shape == W (the axis weight/bias broadcast over).
    weight = jnp.ones((W,), dtype=jnp.float32)
    bias = jnp.zeros((W,), dtype=jnp.float32)

    out = layernorm_convnextv2(x, weight, bias)
    out = jax.block_until_ready(out)

    ref = _reference(x, weight, bias)
    assert out.shape == ref.shape and out.dtype == ref.dtype
    assert jnp.allclose(out, ref, atol=1e-5, rtol=1e-5)
    print("KERNEL_OK")
</pallas_src>

<mosaic_0001>
module attributes {stable_mosaic.version = 11 : i64} {
  func.func @_layernorm_kernel(%arg0: i32, %arg1: i32, %arg2: memref<1x4x256xf32, #tpu.memory_space<vmem>>, %arg3: memref<1x256xf32, #tpu.memory_space<vmem>>, %arg4: memref<1x256xf32, #tpu.memory_space<vmem>>, %arg5: memref<1x4x256xf32, #tpu.memory_space<vmem>>) attributes {dimension_semantics = [#tpu.dimension_semantics<parallel>, #tpu.dimension_semantics<parallel>], iteration_bounds = array<i64: 2, 1>, scalar_prefetch = 0 : i64, scratch_operands = 0 : i64, tpu.core_type = #tpu.core_type<tc>, window_params = [{transform_indices = @transform_0, window_bounds = array<i64: 1, 4, 256>}, {transform_indices = @transform_1, window_bounds = array<i64: 1, 256>}, {transform_indices = @transform_2, window_bounds = array<i64: 1, 256>}, {transform_indices = @transform_3, window_bounds = array<i64: 1, 4, 256>}]} {
    %c0 = arith.constant 0 : index
    %c0_0 = arith.constant 0 : index
    %c0_1 = arith.constant 0 : index
    %0 = vector.load %arg2[%c0, %c0_0, %c0_1] : memref<1x4x256xf32, #tpu.memory_space<vmem>>, vector<1x4x256xf32>
    %cst = arith.constant dense<0.000000e+00> : vector<1x256xf32>
    %1 = vector.multi_reduction <add>, %0, %cst [1] : vector<1x4x256xf32> to vector<1x256xf32>
    %2 = vector.shape_cast %1 : vector<1x256xf32> to vector<1x1x256xf32>
    %cst_2 = arith.constant 4.000000e+00 : f32
    %3 = vector.broadcast %cst_2 : f32 to vector<1x1x256xf32>
    %4 = arith.divf %2, %3 : vector<1x1x256xf32>
    %5 = vector.broadcast %4 : vector<1x1x256xf32> to vector<1x4x256xf32>
    %6 = arith.subf %0, %5 : vector<1x4x256xf32>
    %7 = arith.mulf %6, %6 : vector<1x4x256xf32>
    %cst_3 = arith.constant dense<0.000000e+00> : vector<1x256xf32>
    %8 = vector.multi_reduction <add>, %7, %cst_3 [1] : vector<1x4x256xf32> to vector<1x256xf32>
    %9 = vector.shape_cast %8 : vector<1x256xf32> to vector<1x1x256xf32>
    %cst_4 = arith.constant 4.000000e+00 : f32
    %10 = vector.broadcast %cst_4 : f32 to vector<1x1x256xf32>
    %11 = arith.divf %9, %10 : vector<1x1x256xf32>
    %cst_5 = arith.constant 9.99999997E-7 : f32
    %12 = vector.broadcast %cst_5 : f32 to vector<1x1x256xf32>
    %13 = arith.addf %11, %12 : vector<1x1x256xf32>
    %14 = math.rsqrt %13 : vector<1x1x256xf32>
    %c0_6 = arith.constant 0 : index
    %c0_7 = arith.constant 0 : index
    %15 = vector.load %arg3[%c0_6, %c0_7] : memref<1x256xf32, #tpu.memory_space<vmem>>, vector<1x256xf32>
    %16 = vector.shape_cast %15 : vector<1x256xf32> to vector<1x1x256xf32>
    %c0_8 = arith.constant 0 : index
    %c0_9 = arith.constant 0 : index
    %17 = vector.load %arg4[%c0_8, %c0_9] : memref<1x256xf32, #tpu.memory_space<vmem>>, vector<1x256xf32>
    %18 = vector.shape_cast %17 : vector<1x256xf32> to vector<1x1x256xf32>
    %19 = arith.mulf %16, %14 : vector<1x1x256xf32>
    %20 = vector.broadcast %19 : vector<1x1x256xf32> to vector<1x4x256xf32>
    %21 = arith.mulf %20, %6 : vector<1x4x256xf32>
    %22 = vector.broadcast %18 : vector<1x1x256xf32> to vector<1x4x256xf32>
    %23 = arith.addf %21, %22 : vector<1x4x256xf32>
    %c0_10 = arith.constant 0 : index
    %c0_11 = arith.constant 0 : index
    %c0_12 = arith.constant 0 : index
    %24 = vector.load %arg5[%c0_10, %c0_11, %c0_12] : memref<1x4x256xf32, #tpu.memory_space<vmem>>, vector<1x4x256xf32>
    tpu.vector_store %arg5[%c0_10, %c0_11, %c0_12], %23 {strides = array<i32>} : memref<1x4x256xf32, #tpu.memory_space<vmem>>, vector<1x4x256xf32>,
    return
  }
  func.func @transform_0(%arg0: i32, %arg1: i32) -> (i32, i32, i32) {
    %c0_i32 = arith.constant 0 : i32
    %c0_i32_0 = arith.constant 0 : i32
    return %arg0, %c0_i32, %arg1 : i32, i32, i32
  }
  func.func @transform_1(%arg0: i32, %arg1: i32) -> (i32, i32) {
    %c0_i32 = arith.constant 0 : i32
    %c0_i32_0 = arith.constant 0 : i32
    return %c0_i32, %arg1 : i32, i32
  }
  func.func @transform_2(%arg0: i32, %arg1: i32) -> (i32, i32) {
    %c0_i32 = arith.constant 0 : i32
    %c0_i32_0 = arith.constant 0 : i32
    return %c0_i32, %arg1 : i32, i32
  }
  func.func @transform_3(%arg0: i32, %arg1: i32) -> (i32, i32, i32) {
    %c0_i32 = arith.constant 0 : i32
    %c0_i32_0 = arith.constant 0 : i32
    return %arg0, %c0_i32, %arg1 : i32, i32, i32
  }
}

</mosaic_0001>

<llo_original>
// kernel: tpu_custom_call.1
$region0: #{tpu_custom_call.1}
  #allocation0 [shape = 'u32[]', space=smem, size = 0x4, offset = 0x4, fixed_abs, tag = 'smem constant byte address 0x4 - core index']
  #allocation1 [shape = 'u32[144,128]{1,0:T(1,128)}', space=vmem, size = 0x12000, scoped, tag = 'internal scratch']
  %s0 = inlined_call_operand.hbm [shape: f32[2,4,256], index: 0, kind: input, shape index: {}]
  %s1 = inlined_call_operand.vmem [shape: f32[1,256], index: 1, kind: input, shape index: {}]
  %s2 = inlined_call_operand.vmem [shape: f32[1,256], index: 2, kind: input, shape index: {}]
  %s3 = inlined_call_operand.hbm [shape: f32[2,4,256], index: 3, kind: output, shape index: {}]
  %s4 = sld [smem:[#allocation0]]
  $region49: #{tpu_custom_call.1} parent=0
    _
  %s6 = ssub.s32 1, %s4
  %s7 = scalar_select 0, %s6, %s4
  $region1: #{tpu_custom_call.1} parent=0
    #allocation2 [shape = 'u8[8192]{0}', space=vmem, size = 0x2000, scoped, tag = 'input window, operand 0']
    #allocation3 [shape = 's32[2]{0}', space=sflag, size = 0x8, scoped, tag = 'scoped memory for tpu_custom_call.1']
    #allocation4 [shape = 's32[2]{0}', space=sflag, size = 0x8, scoped, tag = 'scoped memory for tpu_custom_call.1']
    #allocation5 [shape = 'u8[8192]{0}', space=vmem, size = 0x2000, scoped, tag = 'output window, operand 0']
    %8 = vsyncpa [#allocation3], 0
    %s9 = scalar_lea.sflag [#allocation3], 1
    %10 = vsyncpa %s9, 0
    %11 = vsyncpa [#allocation4], 0
    %s12 = scalar_lea.sflag [#allocation4], 1
    %13 = vsyncpa %s12, 0
    loop: start=0, step=1, limit=4
    $region2: #{tpu_custom_call.1} parent=1 // loop_pre_header
      _
    $region3: #{tpu_custom_call.1} parent=1 // loop_header
      %s15 = sphi 0, %s19
      %p16 = scmp.ge.s32.totalorder %s15, 4
      %s22 = sphi 0, %s34
      %s23 = sphi 0, %s30
      %s24 = sphi 0, %s22
      %s25 = sphi 0, %s23
      %s26 = sphi 0, %s24
      %s27 = sphi 0, %s25
      %s39 = sphi 0, %s41
      %s42 = sphi 0, %s39
      %s43 = sphi 0, %s42
      %s59 = sphi 0, %s43
      %s65 = sphi 0, %s67
      %s68 = sphi 0, %s65
      %s69 = sphi 0, %s68
      %s85 = sphi 0, %s69
      %s91 = sphi 0, %s93
      %s94 = sphi 0, %s91
      %s95 = sphi 0, %s94
      %s111 = sphi 0, %s95
      %s119 = sphi 0, %s121
      %s122 = sphi 0, %s119
      %s123 = sphi 0, %s122
      %s139 = sphi 0, %s123
    $region4: #{tpu_custom_call.1} parent=1 // loop_header_branch
      %18 = sbr.rel (%p16) target = $region8
    $region5: #{tpu_custom_call.1} parent=1 // loop_body
      %s20 = ssub.s32 %s15, 1
      %s21 = ssub.s32 %s15, 2
      %s28 = sadd.s32 1, %s23
      %p29 = scmp.ge.s32.totalorder %s28, 1
      %s30 = scalar_select %p29, 0, %s28
      %s31 = sadd.s32 1, %s22
      %s32 = scalar_select %p29, %s31, %s22
      %p33 = scmp.ge.s32.totalorder %s32, 2
      %s34 = scalar_select %p33, 0, %s32
      %s35 = ssub.s32 %s22, %s34
      %s36 = ssub.s32 %s23, %s30
      %s37 = sor.u32 %s35, %s36
      %p38 = scmp.eq.s32.totalorder %s37, 0
      %s40 = sadd.s32 %s39, 1
      %s41 = scalar_select %p38, %s39, %s40
      %p44 = pneg %p38
      %p45 = scmp.eq.s32.totalorder %s15, 1
      %p46 = por %p44, %p45
      %p47 = scmp.ne.s32.totalorder %s39, %s42
      %p48 = scmp.eq.s32.totalorder %s15, 0
      %p49 = por %p47, %p48
      %p50 = scmp.ne.s32.totalorder %s39, %s42
      %p51 = scmp.eq.s32.totalorder %s20, 1
      %p52 = por %p50, %p51
      %p53 = scmp.ne.s32.totalorder %s42, %s43
      %p54 = scmp.eq.s32.totalorder %s20, 0
      %p55 = por %p53, %p54
      %p56 = scmp.ne.s32.totalorder %s42, %s43
      %p57 = scmp.eq.s32.totalorder %s21, 1
      %p58 = por %p56, %p57
      %p60 = scmp.ne.s32.totalorder %s43, %s59
      %p61 = scmp.eq.s32.totalorder %s21, 0
      %p62 = por %p60, %p61
      %s63 = ssub.s32 %s23, %s30
      %p64 = scmp.eq.s32.totalorder %s63, 0
      %s66 = sadd.s32 %s65, 1
      %s67 = scalar_select %p64, %s65, %s66
      %p70 = pneg %p64
      %p71 = scmp.eq.s32.totalorder %s15, 1
      %p72 = por %p70, %p71
      %p73 = scmp.ne.s32.totalorder %s65, %s68
      %p74 = scmp.eq.s32.totalorder %s15, 0
      %p75 = por %p73, %p74
      %p76 = scmp.ne.s32.totalorder %s65, %s68
      %p77 = scmp.eq.s32.totalorder %s20, 1
      %p78 = por %p76, %p77
      %p79 = scmp.ne.s32.totalorder %s68, %s69
      %p80 = scmp.eq.s32.totalorder %s20, 0
      %p81 = por %p79, %p80
      %p82 = scmp.ne.s32.totalorder %s68, %s69
      %p83 = scmp.eq.s32.totalorder %s21, 1
      %p84 = por %p82, %p83
      %p86 = scmp.ne.s32.totalorder %s69, %s85
      %p87 = scmp.eq.s32.totalorder %s21, 0
      %p88 = por %p86, %p87
      %s89 = ssub.s32 %s23, %s30
      %p90 = scmp.eq.s32.totalorder %s89, 0
      %s92 = sadd.s32 %s91, 1
      %s93 = scalar_select %p90, %s91, %s92
      %p96 = pneg %p90
      %p97 = scmp.eq.s32.totalorder %s15, 1
      %p98 = por %p96, %p97
      %p99 = scmp.ne.s32.totalorder %s91, %s94
      %p100 = scmp.eq.s32.totalorder %s15, 0
      %p101 = por %p99, %p100
      %p102 = scmp.ne.s32.totalorder %s91, %s94
      %p103 = scmp.eq.s32.totalorder %s20, 1
      %p104 = por %p102, %p103
      %p105 = scmp.ne.s32.totalorder %s94, %s95
      %p106 = scmp.eq.s32.totalorder %s20, 0
      %p107 = por %p105, %p106
      %p108 = scmp.ne.s32.totalorder %s94, %s95
      %p109 = scmp.eq.s32.totalorder %s21, 1
      %p110 = por %p108, %p109
      %p112 = scmp.ne.s32.totalorder %s95, %s111
      %p113 = scmp.eq.s32.totalorder %s21, 0
      %p114 = por %p112, %p113
      %s115 = ssub.s32 %s22, %s34
      %s116 = ssub.s32 %s23, %s30
      %s117 = sor.u32 %s115, %s116
      %p118 = scmp.eq.s32.totalorder %s117, 0
      %s120 = sadd.s32 %s119, 1
      %s121 = scalar_select %p118, %s119, %s120
      %p124 = pneg %p118
      %p125 = scmp.eq.s32.totalorder %s15, 1
      %p126 = por %p124, %p125
      %p127 = scmp.ne.s32.totalorder %s119, %s122
      %p128 = scmp.eq.s32.totalorder %s15, 0
      %p129 = por %p127, %p128
      %p130 = scmp.ne.s32.totalorder %s119, %s122
      %p131 = scmp.eq.s32.totalorder %s20, 1
      %p132 = por %p130, %p131
      %p133 = scmp.ne.s32.totalorder %s122, %s123
      %p134 = scmp.eq.s32.totalorder %s20, 0
      %p135 = por %p133, %p134
      %p136 = scmp.ne.s32.totalorder %s122, %s123
      %p137 = scmp.eq.s32.totalorder %s21, 1
      %p138 = por %p136, %p137
      %p140 = scmp.ne.s32.totalorder %s123, %s139
      %p141 = scmp.eq.s32.totalorder %s21, 0
      %p142 = por %p140, %p141
      %p143 = scmp.le.s32.totalorder 1, %s15
      %p144 = scmp.lt.s32.totalorder %s15, 3
      %p145 = pnand %p143, %p144
      %p146 = pneg %p145
      // Predicated region
      $region9: #{tpu_custom_call.1} parent=5 // pred_check
        _
      $region10: #{tpu_custom_call.1} parent=5 // pred_check_branch
        %148 = sbr.rel (%p145) target = $region12
      $region11: #{tpu_custom_call.1} parent=5 // pred_region
        %s149 = ssub.s32 %s15, 1
        // Predicated region
        $region13: #{tpu_custom_call.1} parent=11 // pred_check
          %p150 = pneg %p81
        $region14: #{tpu_custom_call.1} parent=11 // pred_check_branch
          %152 = sbr.rel (%p150) target = $region16
        $region15: #{tpu_custom_call.1} parent=11 // pred_region
          %s153 = smul.u32 2, %s25
          %p154 = scmp.lt.s32.totalorder %s153, 1
          %s155 = scalar_select %p154, %s153, 1
          %s156 = scalar_lea.vmem %s1, %s155
          %s157 = smul.u32 2, %s25
        $region16: #{tpu_custom_call.1} parent=11 // pred_fallthru
          _
        // Predicated region
        $region17: #{tpu_custom_call.1} parent=11 // pred_check
          %p158 = pneg %p107
        $region18: #{tpu_custom_call.1} parent=11 // pred_check_branch
          %160 = sbr.rel (%p158) target = $region20
        $region19: #{tpu_custom_call.1} parent=11 // pred_region
          %s161 = smul.u32 2, %s25
          %p162 = scmp.lt.s32.totalorder %s161, 1
          %s163 = scalar_select %p162, %s161, 1
          %s164 = scalar_lea.vmem %s2, %s163
          %s165 = smul.u32 2, %s25
        $region20: #{tpu_custom_call.1} parent=11 // pred_fallthru
          _
      $region12: #{tpu_custom_call.1} parent=5 // pred_fallthru
        _
      %p166 = scmp.lt.s32.totalorder %s15, 2
      // Predicated region
      $region21: #{tpu_custom_call.1} parent=5 // pred_check
        %p167 = pneg %p166
      $region22: #{tpu_custom_call.1} parent=5 // pred_check_branch
        %169 = sbr.rel (%p167) target = $region24
      $region23: #{tpu_custom_call.1} parent=5 // pred_region
        // Predicated region
        $region25: #{tpu_custom_call.1} parent=23 // pred_check
          %p170 = pneg %p49
        $region26: #{tpu_custom_call.1} parent=23 // pred_check_branch
          %172 = sbr.rel (%p170) target = $region28
        $region27: #{tpu_custom_call.1} parent=23 // pred_region
          %s173 = sand.u32 %s39, 1
          %s174 = scalar_lea.sflag [#allocation3], %s173
          %s175 = sand.u32 %s39, 1
          %s176 = smul.addr %s175, 8
          %s177 = scalar_lea.vmem [#allocation2], %s176
          %s178 = smul.u32 2, %s23
          %s180 = ssub.s32 128, 128
          %181 = vsyncadd %s174, %s180
          %s182 = smul.addr %s22, 2
          %s183 = sadd.s32 %s178, %s182
          %s184 = smul.addr %s183, 64
          %s185 = scalar_lea.hbm %s0, %s184
          %s187 = sshll.u32 %s177, 4
          %s188 = int_to_ptr.vmem [resolvable:$true] %s187
          %190 = dma.hbm_to_vmem [thread:$0]  %s185, 128, %s188, %s174
        $region28: #{tpu_custom_call.1} parent=23 // pred_fallthru
          _
      $region24: #{tpu_custom_call.1} parent=5 // pred_fallthru
        _
      %p191 = scmp.le.s32.totalorder 1, %s15
      %p192 = scmp.lt.s32.totalorder %s15, 3
      %p193 = pnand %p191, %p192
      %p194 = pneg %p193
      // Predicated region
      $region29: #{tpu_custom_call.1} parent=5 // pred_check
        _
      $region30: #{tpu_custom_call.1} parent=5 // pred_check_branch
        %196 = sbr.rel (%p193) target = $region32
      $region31: #{tpu_custom_call.1} parent=5 // pred_region
        %s197 = ssub.s32 %s15, 1
        %s198 = sand.u32 %s42, 1
        %s199 = scalar_lea.sflag [#allocation3], %s198
        %s200 = sand.u32 %s42, 1
        %s201 = smul.addr %s200, 8
        %s202 = scalar_lea.vmem [#allocation2], %s201
        // Predicated region
        $region33: #{tpu_custom_call.1} parent=31 // pred_check
          %p203 = pneg %p55
        $region34: #{tpu_custom_call.1} parent=31 // pred_check_branch
          %205 = sbr.rel (%p203) target = $region36
        $region35: #{tpu_custom_call.1} parent=31 // pred_region
          %206 = dma.done %s199, 128
        $region36: #{tpu_custom_call.1} parent=31 // pred_fallthru
          _
        %s207 = sand.u32 %s42, 1
        %s208 = scalar_lea.sflag [#allocation3], %s207
        %s209 = sand.u32 %s42, 1
        %s210 = smul.addr %s209, 8
        %s211 = scalar_lea.vmem [#allocation2], %s210
        %p212 = pneg %p55
        %p213 = pneg %p52
        %s214 = smul.u32 2, %s25
        %p215 = scmp.lt.s32.totalorder %s214, 1
        %s216 = scalar_select %p215, %s214, 1
        %s217 = scalar_lea.vmem %s1, %s216
        %p218 = pneg %p81
        %p219 = pneg %p78
        %s220 = smul.u32 2, %s25
        %p221 = scmp.lt.s32.totalorder %s220, 1
        %s222 = scalar_select %p221, %s220, 1
        %s223 = scalar_lea.vmem %s2, %s222
        %p224 = pneg %p107
        %p225 = pneg %p104
        %p226 = pneg %p135
        %p227 = pneg %p132
        %s228 = sand.u32 %s122, 1
        %s229 = scalar_lea.sflag [#allocation4], %s228
        %s230 = sand.u32 %s122, 1
        %s231 = smul.addr %s230, 8
        %s232 = scalar_lea.vmem [#allocation5], %s231
        %s233 = smul.u32 2, %s25
        %s234 = smul.u32 2, %s25
        %p235 = scmp.lt.s32.totalorder %s234, 1
        %s236 = scalar_select %p235, %s234, 1
        %s237 = scalar_lea.vmem %s1, %s236
        %s238 = smul.u32 2, %s25
        %s239 = smul.u32 2, %s25
        %p240 = scmp.lt.s32.totalorder %s239, 1
        %s241 = scalar_select %p240, %s239, 1
        %s242 = scalar_lea.vmem %s2, %s241
        %s243 = smul.u32 2, %s25
        %s244 = smul.u32 2, %s25
        %v245 = vld [vmem:[%s202] sm:$0xff]
        %v247 = vcombine.high %v245, %v245
        %vm249 = vcmask 1043456
        %v250 = vsel %vm249, %v245, 0.0
        %v251 = vrot.slane %v250, 4
        %v252 = vadd.f32 %v250, %v251
        %v253 = vrot.slane %v252, 2
        %v254 = vadd.f32 %v252, %v253
        %v255 = vrot.slane %v254, 1
        %v256 = vadd.f32 %v254, %v255
        %v257 = vsel %vm249, %v247, 0.0
        %v258 = vrot.slane %v257, 4
        %v259 = vadd.f32 %v257, %v258
        %v260 = vrot.slane %v259, 2
        %v261 = vadd.f32 %v259, %v260
        %v262 = vrot.slane %v261, 1
        %v263 = vadd.f32 %v261, %v262
        %v264 = vrcp.pop 4.0
        %v265 = vmul.f32 %v256, %v264
        %v266 = vmul.f32 %v263, %v264
        %v269 = vcombine.low %v265, %v266
        %v271 = vsub.f32 %v245, %v269
        %v272 = vmul.f32 %v271, %v271
        %v274 = vcombine.high %v272, %v272
        %v276 = vsel %vm249, %v272, 0.0
        %v277 = vrot.slane %v276, 4
        %v278 = vadd.f32 %v276, %v277
        %v279 = vrot.slane %v278, 2
        %v280 = vadd.f32 %v278, %v279
        %v281 = vrot.slane %v280, 1
        %v282 = vadd.f32 %v280, %v281
        %v283 = vsel %vm249, %v274, 0.0
        %v284 = vrot.slane %v283, 4
        %v285 = vadd.f32 %v283, %v284
        %v286 = vrot.slane %v285, 2
        %v287 = vadd.f32 %v285, %v286
        %v288 = vrot.slane %v287, 1
        %v289 = vadd.f32 %v287, %v288
        %v290 = vmul.f32 %v282, %v264
        %v291 = vmul.f32 %v289, %v264
        %v292 = vadd.f32 %v290, 1e-06
        %v293 = vadd.f32 %v291, 1e-06
        %v294 = vrsqrt.pop %v292
        %v295 = vrsqrt.pop %v293
        %v296 = vld [vmem:[%s237] sm:$0x3]
        %v297 = vld [vmem:[%s242] sm:$0x3]
        %v300 = vcombine.low %v294, %v295
        %v302 = vunpack.c.l.s4 1966171168
        %v303 = vunpack.c.0.s8 %v302
        %v304 = vlaneseq
        %v305 = vshrl.u32 %v304, 7
        %v306 = vsub.s32 %v303, %v305
        %v307 = vrot.slane %v300, %v306
        %v309 = vunpack.c.l.s4 1966171168
        %v310 = vunpack.c.0.s8 %v309
        %v311 = vlaneseq
        %v312 = vshrl.u32 %v311, 7
        %v313 = vsub.s32 %v310, %v312
        %v314 = vrot.slane %v307, %v313
        %v316 = vmul.f32 %v296, %v314
        %v318 = vlaneseq
        %v319 = vshrl.u32 %v318, 7
        %v320 = vsub.s32 0, %v319
        %v321 = vrot.slane %v316, %v320
        %v322 = vlaneseq
        %v323 = vshrl.u32 %v322, 7
        %v324 = vsub.s32 1, %v323
        %v325 = vrot.slane %v316, %v324
        %v329 = vcombine.high %v271, %v271
        %v331 = vmul.f32 %v321, %v271
        %v332 = vmul.f32 %v325, %v329
        %v334 = vlaneseq
        %v335 = vshrl.u32 %v334, 7
        %v336 = vsub.s32 0, %v335
        %v337 = vrot.slane %v297, %v336
        %v338 = vlaneseq
        %v339 = vshrl.u32 %v338, 7
        %v340 = vsub.s32 1, %v339
        %v341 = vrot.slane %v297, %v340
        %v344 = vadd.f32 %v331, %v337
        %v345 = vadd.f32 %v332, %v341
        %v348 = vcombine.low %v344, %v345
        %350 = vst [vmem:[%s232] sm:$0xff] %v348
        %s351 = sand.u32 %s122, 1
        %s352 = scalar_lea.sflag [#allocation4], %s351
        %s353 = sand.u32 %s122, 1
        %s354 = smul.addr %s353, 8
        %s355 = scalar_lea.vmem [#allocation5], %s354
        // Predicated region
        $region37: #{tpu_custom_call.1} parent=31 // pred_check
          %p356 = pneg %p132
        $region38: #{tpu_custom_call.1} parent=31 // pred_check_branch
          %358 = sbr.rel (%p356) target = $region40
        $region39: #{tpu_custom_call.1} parent=31 // pred_region
          %s359 = smul.u32 2, %s25
          %s361 = ssub.s32 128, 128
          %362 = vsyncadd %s352, %s361
          %s363 = smul.addr %s24, 2
          %s364 = sadd.s32 %s359, %s363
          %s365 = smul.addr %s364, 64
          %s366 = scalar_lea.hbm %s3, %s365
          %s368 = sshll.u32 %s355, 4
          %s369 = int_to_ptr.vmem [resolvable:$true] %s368
          %371 = dma.vmem_to_hbm [thread:$0]  %s369, 128, %s366, %s352
        $region40: #{tpu_custom_call.1} parent=31 // pred_fallthru
          _
      $region32: #{tpu_custom_call.1} parent=5 // pred_fallthru
        _
      %p372 = scmp.le.s32.totalorder 2, %s15
      // Predicated region
      $region41: #{tpu_custom_call.1} parent=5 // pred_check
        %p373 = pneg %p372
      $region42: #{tpu_custom_call.1} parent=5 // pred_check_branch
        %375 = sbr.rel (%p373) target = $region44
      $region43: #{tpu_custom_call.1} parent=5 // pred_region
        %s376 = ssub.s32 %s15, 2
        // Predicated region
        $region45: #{tpu_custom_call.1} parent=43 // pred_check
          %p377 = pneg %p138
        $region46: #{tpu_custom_call.1} parent=43 // pred_check_branch
          %379 = sbr.rel (%p377) target = $region48
        $region47: #{tpu_custom_call.1} parent=43 // pred_region
          %s380 = sand.u32 %s123, 1
          %s381 = scalar_lea.sflag [#allocation4], %s380
          %s382 = sand.u32 %s123, 1
          %s383 = smul.addr %s382, 8
          %s384 = scalar_lea.vmem [#allocation5], %s383
          %385 = dma.done %s381, 128
        $region48: #{tpu_custom_call.1} parent=43 // pred_fallthru
          _
      $region44: #{tpu_custom_call.1} parent=5 // pred_fallthru
        _
    $region6: #{tpu_custom_call.1} parent=1 // loop_footer
      %s19 = sadd.s32 1, %s15
    $region7: #{tpu_custom_call.1} parent=1 // loop_footer_branch
      %14 = sbr.rel target = $region3
    $region8: #{tpu_custom_call.1} parent=1 // loop_exit
      _
    %386 = vsyncpa [#allocation3], 1
    %s387 = scalar_lea.sflag [#allocation3], 1
    %388 = vsyncpa %s387, 1
    %389 = vsyncpa [#allocation4], 1
    %s390 = scalar_lea.sflag [#allocation4], 1
    %391 = vsyncpa %s390, 1

</llo_original>
